<compile_context>
chip_gen: v7x
topology: tpu7x:2x2x1
jax: 0.10.0
libtpu: 0.0.40
codegen_flags: <defaults>
</compile_context>

<pallas_src>
import jax
import jax.numpy as jnp
from jax.experimental import pallas as pl
from jax.experimental.pallas import tpu as pltpu

LN_EPS = 1e-5  # torch.nn.LayerNorm default


def _make_patch_embed_kernel(ge):
    """ge = n_groups * n_embed_dim (number of output lanes)."""

    def kernel(x_ref, w_ref, p_ref, seg_ref, o_ref):
        # x_ref:   (Bt, F_in)        input rows for this batch tile
        # w_ref:   (F_in, 2*GE)      [W_bd | W_bd @ seg]  (mean folded in)
        # p_ref:   (3, 2*GE)         rows = [bias_aug; gamma|0; beta|0]
        # seg_ref: (2*GE, GE)        variance-averaging matrix (1/(2E) blocks)
        # o_ref:   (Bt, GE)          lane-dense output
        x = x_ref[...]
        w = w_ref[...]
        bias_aug = p_ref[0:1, :]                       # (1, 2*GE)

        # One MXU matmul -> lanes [0:GE] = y, lanes [GE:2GE] = per-group mean.
        ym = jnp.dot(x, w, preferred_element_type=jnp.float32) + bias_aug

        # Align mean with y via a lane rotation (XLU): [y-mean | mean-y].
        c = ym - pltpu.roll(ym, ge, axis=1)

        # (y-mean)^2 is identical in both halves; seg_ref weights 1/(2E) so the
        # matmul yields the exact biased per-group variance (two-pass numerics).
        var = jnp.dot(c * c, seg_ref[...], preferred_element_type=jnp.float32)

        gamma = p_ref[1:2, :ge]                        # (1, GE)
        beta = p_ref[2:3, :ge]                         # (1, GE)
        out = c[:, :ge] * jax.lax.rsqrt(var + LN_EPS) * gamma + beta
        o_ref[...] = out.astype(o_ref.dtype)

    return kernel


def prepare_patch_embedding_params(weights, biases, gammas, betas,
                                   n_features_per_group, n_embed_dim):
    """One-time parameter packing (outside the per-forward hot path).

    Returns:
      w_aug:   [input_dim, 2*G*E]  = [W_bd | W_bd @ seg]
      params:  [3, 2*G*E]          rows = (bias_aug, gamma|0, beta|0)
      seg_var: [2*G*E, G*E]        variance-averaging matrix (1/(2E) blocks)
    """
    input_dim = sum(n_features_per_group)
    n_groups = len(n_features_per_group)
    ge = n_groups * n_embed_dim

    offsets = [0]
    for n in n_features_per_group:
        offsets.append(offsets[-1] + n)

    # Block-diagonal projection weight.
    w_cols = []
    for i, nf in enumerate(n_features_per_group):
        w_cols.append(jnp.pad(weights[i],
                              ((offsets[i], input_dim - offsets[i] - nf),
                               (0, 0))))
    w_bd = jnp.concatenate(w_cols, axis=1)                       # (F_in, GE)

    # Per-group averaging matrix seg (GE, GE): 1/E within a group.
    gid = jnp.arange(ge) // n_embed_dim
    seg = jnp.where(gid[:, None] == gid[None, :],
                    1.0 / n_embed_dim, 0.0).astype(jnp.float32)

    # Fold the group-mean columns into the packed weight / bias.
    w_aug = jnp.concatenate([w_bd, w_bd @ seg], axis=1)          # (F_in, 2GE)
    bias_c = jnp.concatenate(biases, axis=0)                     # (GE,)
    bias_aug = jnp.concatenate([bias_c, bias_c @ seg], axis=0)   # (2GE,)

    gamma_c = jnp.concatenate(gammas, axis=0)                    # (GE,)
    beta_c = jnp.concatenate(betas, axis=0)                      # (GE,)
    zeros = jnp.zeros((ge,), jnp.float32)
    params = jnp.stack([bias_aug,
                        jnp.concatenate([gamma_c, zeros], axis=0),
                        jnp.concatenate([beta_c, zeros], axis=0)],
                       axis=0)                                   # (3, 2GE)

    # Variance averaging matrix (2GE, GE): both halves of (y-mean)^2 match, so
    # weighting by 1/(2E) reproduces the exact biased per-group variance.
    gid2 = (jnp.arange(2 * ge) % ge) // n_embed_dim
    seg_var = jnp.where(gid2[:, None] == gid[None, :],
                        1.0 / (2 * n_embed_dim), 0.0).astype(jnp.float32)
    return w_aug, params, seg_var


def _pick_batch_tile(batch):
    """Large tiles to amortise ~0.35us/step overhead, >=2 grid steps when the
    batch allows (v7x dual-TC), capped so the lane-padded double-buffered
    footprint (~2 KB/row) stays well under v5e's 16 MiB scoped-VMEM default."""
    MAX_TILE = 4096
    MIN_TILE = 8
    if batch <= MIN_TILE:
        return batch
    n_tiles = max(2, pl.cdiv(batch, MAX_TILE))
    tile = pl.cdiv(batch, n_tiles)
    tile = ((tile + 7) // 8) * 8          # sublane-align
    return min(tile, MAX_TILE)


def patch_embedding_pallas(x, w_aug, params, seg_var, n_groups, n_embed_dim):
    """
    Args:
      x:       [batch, input_dim] float32
      w_aug:   [input_dim, 2*G*E]   (from prepare_patch_embedding_params)
      params:  [3, 2*G*E]
      seg_var: [2*G*E, G*E]
    Returns:
      [batch, n_groups, n_embed_dim]
    """
    batch, input_dim = x.shape
    ge = n_groups * n_embed_dim

    block_b = _pick_batch_tile(batch)
    padded = pl.cdiv(batch, block_b) * block_b
    if padded != batch:
        # Zero-pad to a whole number of tiles (finite garbage rows, sliced off).
        x = jnp.pad(x, ((0, padded - batch), (0, 0)))
    grid = (padded // block_b,)

    out = pl.pallas_call(
        _make_patch_embed_kernel(ge),
        out_shape=jax.ShapeDtypeStruct((padded, ge), x.dtype),
        grid=grid,
        in_specs=[
            pl.BlockSpec((block_b, input_dim), lambda b: (b, 0)),
            pl.BlockSpec((input_dim, 2 * ge), lambda b: (0, 0)),  # resident
            pl.BlockSpec((3, 2 * ge), lambda b: (0, 0)),          # resident
            pl.BlockSpec((2 * ge, ge), lambda b: (0, 0)),         # resident
        ],
        out_specs=pl.BlockSpec((block_b, ge), lambda b: (b, 0)),
        compiler_params=pltpu.CompilerParams(
            dimension_semantics=("parallel",),
            vmem_limit_bytes=32 * 1024 * 1024,
        ),
    )(x, w_aug, params, seg_var)

    if padded != batch:
        out = out[:batch]
    # Lane-dense (B, G*E) -> (B, G, E): free row-major reshape (no transpose).
    return out.reshape(batch, n_groups, n_embed_dim)


def patch_embedding_ref(x, weights, biases, gammas, betas, n_features_per_group):
    """Pure-JAX reference mirroring the PyTorch forward."""
    offsets = [0]
    for n in n_features_per_group:
        offsets.append(offsets[-1] + n)
    outs = []
    for i in range(len(n_features_per_group)):
        g = x[:, offsets[i]:offsets[i + 1]]
        y = g @ weights[i] + biases[i]
        mean = jnp.mean(y, axis=-1, keepdims=True)
        var = jnp.mean((y - mean) ** 2, axis=-1, keepdims=True)
        xhat = (y - mean) / jnp.sqrt(var + LN_EPS)
        outs.append(xhat * gammas[i] + betas[i])
    return jnp.stack(outs, axis=1)


if __name__ == "__main__":
    # Small shapes consistent with the module: 4 groups of distinct sizes,
    # input_dim = sum of group sizes, embed_dim = 16.
    n_features_per_group = [6, 10, 8, 4]
    input_dim = sum(n_features_per_group)       # 28
    n_groups = len(n_features_per_group)        # 4
    n_embed_dim = 16

    key = jax.random.PRNGKey(0)
    keys = jax.random.split(key, 2 + 4 * n_groups)

    weights, biases, gammas, betas = [], [], [], []
    k = 2
    for nf in n_features_per_group:
        bound = 1.0 / (nf ** 0.5)  # mimic nn.Linear init range (synthetic)
        weights.append(jax.random.uniform(keys[k], (nf, n_embed_dim),
                                          minval=-bound, maxval=bound,
                                          dtype=jnp.float32)); k += 1
        biases.append(jax.random.uniform(keys[k], (n_embed_dim,),
                                         minval=-bound, maxval=bound,
                                         dtype=jnp.float32)); k += 1
        gammas.append(1.0 + 0.1 * jax.random.normal(keys[k], (n_embed_dim,),
                                                    dtype=jnp.float32)); k += 1
        betas.append(0.1 * jax.random.normal(keys[k], (n_embed_dim,),
                                             dtype=jnp.float32)); k += 1

    # One-time parameter packing (outside the per-forward hot path).
    w_aug, params, seg_var = prepare_patch_embedding_params(
        weights, biases, gammas, betas, n_features_per_group, n_embed_dim)

    # Case 1: small, tile-aligned batch.
    batch = 8
    x = jax.random.normal(keys[0], (batch, input_dim), dtype=jnp.float32)
    out = patch_embedding_pallas(x, w_aug, params, seg_var,
                                 n_groups, n_embed_dim)
    out = jax.block_until_ready(out)
    ref = patch_embedding_ref(x, weights, biases, gammas, betas,
                              n_features_per_group)
    assert out.shape == (batch, n_groups, n_embed_dim), out.shape
    assert jnp.allclose(out, ref, atol=1e-4, rtol=1e-5), \
        float(jnp.max(jnp.abs(out - ref)))

    # Case 2: non-divisible batch exercises the cdiv + padded-tile path.
    batch2 = 13
    x2 = jax.random.normal(keys[1], (batch2, input_dim), dtype=jnp.float32)
    out2 = patch_embedding_pallas(x2, w_aug, params, seg_var,
                                  n_groups, n_embed_dim)
    out2 = jax.block_until_ready(out2)
    ref2 = patch_embedding_ref(x2, weights, biases, gammas, betas,
                               n_features_per_group)
    assert out2.shape == (batch2, n_groups, n_embed_dim), out2.shape
    assert jnp.allclose(out2, ref2, atol=1e-4, rtol=1e-5), \
        float(jnp.max(jnp.abs(out2 - ref2)))

    print("KERNEL_OK")
</pallas_src>

<mosaic_0001>
module attributes {stable_mosaic.version = 11 : i64} {
  func.func @kernel(%arg0: i32, %arg1: memref<8x28xf32, #tpu.memory_space<vmem>>, %arg2: memref<28x128xf32, #tpu.memory_space<vmem>>, %arg3: memref<3x128xf32, #tpu.memory_space<vmem>>, %arg4: memref<128x64xf32, #tpu.memory_space<vmem>>, %arg5: memref<8x64xf32, #tpu.memory_space<vmem>>) attributes {dimension_semantics = [#tpu.dimension_semantics<parallel>], iteration_bounds = array<i64: 1>, scalar_prefetch = 0 : i64, scratch_operands = 0 : i64, tpu.core_type = #tpu.core_type<tc>, window_params = [{transform_indices = @transform_0, window_bounds = array<i64: 8, 28>}, {pipeline_mode = #tpu.pipeline_mode<synchronous>, transform_indices = @transform_1, window_bounds = array<i64: 28, 128>}, {pipeline_mode = #tpu.pipeline_mode<synchronous>, transform_indices = @transform_2, window_bounds = array<i64: 3, 128>}, {pipeline_mode = #tpu.pipeline_mode<synchronous>, transform_indices = @transform_3, window_bounds = array<i64: 128, 64>}, {transform_indices = @transform_4, window_bounds = array<i64: 8, 64>}]} {
    %c0 = arith.constant 0 : index
    %c0_0 = arith.constant 0 : index
    %0 = vector.load %arg1[%c0, %c0_0] : memref<8x28xf32, #tpu.memory_space<vmem>>, vector<8x28xf32>
    %c0_1 = arith.constant 0 : index
    %c0_2 = arith.constant 0 : index
    %1 = vector.load %arg2[%c0_1, %c0_2] : memref<28x128xf32, #tpu.memory_space<vmem>>, vector<28x128xf32>
    %c0_3 = arith.constant 0 : index
    %c0_4 = arith.constant 0 : index
    %2 = vector.load %arg3[%c0_3, %c0_4] : memref<3x128xf32, #tpu.memory_space<vmem>>, vector<1x128xf32>
    %cst = arith.constant dense<0.000000e+00> : vector<8x128xf32>
    %3 = tpu.matmul %0, %1, %cst {dimension_numbers = #tpu.dot_dimension_numbers<[1], [0], [0], [1], [0, 0, 1, 1], [], []>} : vector<8x28xf32>, vector<28x128xf32>, vector<8x128xf32> -> vector<8x128xf32>
    %4 = vector.broadcast %2 : vector<1x128xf32> to vector<8x128xf32>
    %5 = arith.addf %3, %4 : vector<8x128xf32>
    %c64_i32 = arith.constant 64 : i32
    %6 = tpu.dynamic_rotate %5 by %c64_i32 dim 1 : vector<8x128xf32>, i32 -> vector<8x128xf32>
    %7 = arith.subf %5, %6 : vector<8x128xf32>
    %8 = arith.mulf %7, %7 : vector<8x128xf32>
    %c0_5 = arith.constant 0 : index
    %c0_6 = arith.constant 0 : index
    %9 = vector.load %arg4[%c0_5, %c0_6] : memref<128x64xf32, #tpu.memory_space<vmem>>, vector<128x64xf32>
    %cst_7 = arith.constant dense<0.000000e+00> : vector<8x64xf32>
    %10 = tpu.matmul %8, %9, %cst_7 {dimension_numbers = #tpu.dot_dimension_numbers<[1], [0], [0], [1], [0, 0, 1, 1], [], []>} : vector<8x128xf32>, vector<128x64xf32>, vector<8x64xf32> -> vector<8x64xf32>
    %c1 = arith.constant 1 : index
    %c0_8 = arith.constant 0 : index
    %11 = vector.load %arg3[%c1, %c0_8] : memref<3x128xf32, #tpu.memory_space<vmem>>, vector<1x64xf32>
    %c2 = arith.constant 2 : index
    %c0_9 = arith.constant 0 : index
    %12 = vector.load %arg3[%c2, %c0_9] : memref<3x128xf32, #tpu.memory_space<vmem>>, vector<1x64xf32>
    %13 = vector.extract_strided_slice %7 {offsets = [0, 0], sizes = [8, 64], strides = [1, 1]} : vector<8x128xf32> to vector<8x64xf32>
    %cst_10 = arith.constant 9.99999974E-6 : f32
    %14 = vector.broadcast %cst_10 : f32 to vector<8x64xf32>
    %15 = arith.addf %10, %14 : vector<8x64xf32>
    %16 = math.rsqrt %15 : vector<8x64xf32>
    %17 = arith.mulf %13, %16 : vector<8x64xf32>
    %18 = vector.broadcast %11 : vector<1x64xf32> to vector<8x64xf32>
    %19 = arith.mulf %17, %18 : vector<8x64xf32>
    %20 = vector.broadcast %12 : vector<1x64xf32> to vector<8x64xf32>
    %21 = arith.addf %19, %20 : vector<8x64xf32>
    %c0_11 = arith.constant 0 : index
    %c0_12 = arith.constant 0 : index
    %22 = vector.load %arg5[%c0_11, %c0_12] : memref<8x64xf32, #tpu.memory_space<vmem>>, vector<8x64xf32>
    tpu.vector_store %arg5[%c0_11, %c0_12], %21 {strides = array<i32>} : memref<8x64xf32, #tpu.memory_space<vmem>>, vector<8x64xf32>,
    return
  }
  func.func @transform_0(%arg0: i32) -> (i32, i32) {
    %c0_i32 = arith.constant 0 : i32
    %c0_i32_0 = arith.constant 0 : i32
    return %arg0, %c0_i32 : i32, i32
  }
  func.func @transform_1(%arg0: i32) -> (i32, i32) {
    %c0_i32 = arith.constant 0 : i32
    %c0_i32_0 = arith.constant 0 : i32
    %c0_i32_1 = arith.constant 0 : i32
    return %c0_i32, %c0_i32_0 : i32, i32
  }
  func.func @transform_2(%arg0: i32) -> (i32, i32) {
    %c0_i32 = arith.constant 0 : i32
    %c0_i32_0 = arith.constant 0 : i32
    %c0_i32_1 = arith.constant 0 : i32
    return %c0_i32, %c0_i32_0 : i32, i32
  }
  func.func @transform_3(%arg0: i32) -> (i32, i32) {
    %c0_i32 = arith.constant 0 : i32
    %c0_i32_0 = arith.constant 0 : i32
    %c0_i32_1 = arith.constant 0 : i32
    return %c0_i32, %c0_i32_0 : i32, i32
  }
  func.func @transform_4(%arg0: i32) -> (i32, i32) {
    %c0_i32 = arith.constant 0 : i32
    %c0_i32_0 = arith.constant 0 : i32
    return %arg0, %c0_i32 : i32, i32
  }
}

</mosaic_0001>

<llo_original>
// kernel: tpu_custom_call.1
$region0: #{tpu_custom_call.1}
  #allocation0 [shape = 'u32[]', space=smem, size = 0x4, offset = 0x4, fixed_abs, tag = 'smem constant byte address 0x4 - core index']
  #allocation1 [shape = 'u32[144,128]{1,0:T(1,128)}', space=vmem, size = 0x12000, scoped, tag = 'internal scratch']
  %s0 = inlined_call_operand.vmem [shape: f32[8,28], index: 0, kind: input, shape index: {}]
  %s1 = inlined_call_operand.vmem [shape: f32[28,128], index: 1, kind: input, shape index: {}]
  %s2 = inlined_call_operand.vmem [shape: f32[3,128], index: 2, kind: input, shape index: {}]
  %s3 = inlined_call_operand.vmem [shape: f32[128,64], index: 3, kind: input, shape index: {}]
  %s4 = inlined_call_operand.hbm [shape: f32[8,64], index: 4, kind: output, shape index: {}]
  %s5 = sld [smem:[#allocation0]]
  $region26: #{tpu_custom_call.1} parent=0
    _
  %s7 = ssub.s32 1, %s5
  %s8 = scalar_select 0, %s7, %s5
  $region1: #{tpu_custom_call.1} parent=0
    #allocation2 [shape = 'u8[4096]{0}', space=vmem, size = 0x1000, scoped, tag = 'output window, operand 0, single buffered']
    #allocation3 [shape = 's32[1]{0}', space=sflag, size = 0x4, scoped, tag = 'scoped memory for tpu_custom_call.1']
    %9 = vsyncpa [#allocation3], 0
    // Predicated region
    $region2: #{tpu_custom_call.1} parent=1 // pred_check
      _
    $region3: #{tpu_custom_call.1} parent=1 // pred_check_branch
      %11 = sbr.rel (0) target = $region5
    $region4: #{tpu_custom_call.1} parent=1 // pred_region
      _
    $region5: #{tpu_custom_call.1} parent=1 // pred_fallthru
      _
    // Predicated region
    $region6: #{tpu_custom_call.1} parent=1 // pred_check
      _
    $region7: #{tpu_custom_call.1} parent=1 // pred_check_branch
      %13 = sbr.rel (0) target = $region9
    $region8: #{tpu_custom_call.1} parent=1 // pred_region
      _
    $region9: #{tpu_custom_call.1} parent=1 // pred_fallthru
      _
    // Predicated region
    $region10: #{tpu_custom_call.1} parent=1 // pred_check
      _
    $region11: #{tpu_custom_call.1} parent=1 // pred_check_branch
      %15 = sbr.rel (0) target = $region13
    $region12: #{tpu_custom_call.1} parent=1 // pred_region
      _
    $region13: #{tpu_custom_call.1} parent=1 // pred_fallthru
      _
    // Predicated region
    $region14: #{tpu_custom_call.1} parent=1 // pred_check
      _
    $region15: #{tpu_custom_call.1} parent=1 // pred_check_branch
      %17 = sbr.rel (0) target = $region17
    $region16: #{tpu_custom_call.1} parent=1 // pred_region
      _
    $region17: #{tpu_custom_call.1} parent=1 // pred_fallthru
      _
    %v18 = vld [vmem:[%s0] sm:$0xff]
    %v19 = vld [vmem:[%s1] sm:$0xff]
    %v20 = vld [vmem:[%s1 + $0x8] sm:$0xff]
    %v21 = vld [vmem:[%s1 + $0x10] sm:$0xff]
    %v22 = vld [vmem:[%s1 + $0x18] sm:$0xf]
    %v23 = vld [vmem:[%s2] sm:$0x1]
    %v24 = vlaneseq
    %v25 = vshrl.u32 %v24, 7
    %v26 = vsub.s32 0, %v25
    %v27 = vrot.slane %v23, %v26
    %vm28 = vcmask 228352
    %v30 = vsel %vm28, %v18, 0
    %vm32 = vcmask 1043456
    %v34 = vsel %vm32, %v22, 0
    %36 = vmatprep.subr.mxu0 0.0
    %37 = vmatpush1.msra.mxu0 %v19
    %38 = vmatprep.subr.mxu0 0.0
    %39 = vmatpush1.msra.mxu0 %v20
    %40 = vmatprep.subr.mxu0 0.0
    %41 = vmatpush1.msra.mxu0 %v21
    %42 = vmatprep.subr.mxu0 0.0
    %43 = vmatpush1.msra.mxu0 %v34
    %44 = vmatprep.subr.mxu0 0.0
    %45 = vmatpush1.msra.mxu0 0.0
    %46 = vmatprep.subr.mxu0 0.0
    %47 = vmatpush1.msra.mxu0 0.0
    %48 = vmatprep.subr.mxu0 0.0
    %49 = vmatpush1.msra.mxu0 0.0
    %50 = vmatprep.subr.mxu0 0.0
    %51 = vmatpush1.msra.mxu0 0.0
    %52 = vmatprep.subr.mxu0 0.0
    %53 = vmatpush1.msra.mxu0 0.0
    %54 = vmatprep.subr.mxu0 0.0
    %55 = vmatpush1.msra.mxu0 0.0
    %56 = vmatprep.subr.mxu0 0.0
    %57 = vmatpush1.msra.mxu0 0.0
    %58 = vmatprep.subr.mxu0 0.0
    %59 = vmatpush1.msra.mxu0 0.0
    %60 = vmatprep.subr.mxu0 0.0
    %61 = vmatpush1.msra.mxu0 0.0
    %62 = vmatprep.subr.mxu0 0.0
    %63 = vmatpush1.msra.mxu0 0.0
    %64 = vmatprep.subr.mxu0 0.0
    %65 = vmatpush1.msra.mxu0 0.0
    %66 = vmatprep.subr.mxu0 0.0
    %67 = vmatpush1.msra.mxu0 0.0
    %68 = vmatprep.subr.mxu0 0.0
    %69 = vmatpush1.msra.mxu0 0.0
    %70 = vmatprep.subr.mxu0 0.0
    %71 = vmatpush1.msra.mxu0 0.0
    %72 = vmatprep.subr.mxu0 0.0
    %73 = vmatpush1.msra.mxu0 0.0
    %74 = vmatprep.subr.mxu0 0.0
    %75 = vmatpush1.msra.mxu0 0.0
    %76 = vmatprep.subr.mxu0 0.0
    %77 = vmatpush1.msra.mxu0 0.0
    %78 = vmatprep.subr.mxu0 0.0
    %79 = vmatpush1.msra.mxu0 0.0
    %80 = vmatprep.subr.mxu0 0.0
    %81 = vmatpush1.msra.mxu0 0.0
    %82 = vmatprep.subr.mxu0 0.0
    %83 = vmatpush1.msra.mxu0 0.0
    %84 = vmatprep.subr.mxu0 0.0
    %85 = vmatpush1.msra.mxu0 0.0
    %86 = vmatprep.subr.mxu0 0.0
    %87 = vmatpush1.msra.mxu0 0.0
    %88 = vmatprep.subr.mxu0 0.0
    %89 = vmatpush1.msra.mxu0 0.0
    %90 = vmatprep.subr.mxu0 0.0
    %91 = vmatpush1.msra.mxu0 0.0
    %92 = vmatprep.subr.mxu0 0.0
    %93 = vmatpush1.msra.mxu0 0.0
    %94 = vmatprep.subr.mxu0 0.0
    %95 = vmatpush1.msra.mxu0 0.0
    %96 = vmatprep.subr.mxu0 0.0
    %97 = vmatpush1.msra.mxu0 0.0
    %98 = vmatprep.subr.mxu0 0.0
    %99 = vmatpush1.msra.mxu0 0.0
    %100 = vmatprep.mubr.f32.mxu0 0.0
    %101 = vmatmul.mubr.f32.gmra.mrb[0].mxu0 %v30
    %v102 = vpop.f32.mrb[0].mxu0
    %v103 = vadd.f32 %v27, %v102
    %v104 = vpop.f32.mrb[0].mxu0
    %105 = vdwg.mxu0
    %106 = vrot.lane.b32.xlu0 %v103, 64
    %v107 = vpop.permute.xlu0 %106
    %v108 = vsub.f32 %v103, %v107
    %v109 = vmul.f32 %v108, %v108
    %v110 = vld [vmem:[%s3] sm:$0xff]
    %v111 = vld [vmem:[%s3 + $0x8] sm:$0xff]
    %v112 = vld [vmem:[%s3 + $0x10] sm:$0xff]
    %v113 = vld [vmem:[%s3 + $0x18] sm:$0xff]
    %v114 = vld [vmem:[%s3 + $0x20] sm:$0xff]
    %v115 = vld [vmem:[%s3 + $0x28] sm:$0xff]
    %v116 = vld [vmem:[%s3 + $0x30] sm:$0xff]
    %v117 = vld [vmem:[%s3 + $0x38] sm:$0xff]
    %v118 = vld [vmem:[%s3 + $0x40] sm:$0xff]
    %v119 = vld [vmem:[%s3 + $0x48] sm:$0xff]
    %v120 = vld [vmem:[%s3 + $0x50] sm:$0xff]
    %v121 = vld [vmem:[%s3 + $0x58] sm:$0xff]
    %v122 = vld [vmem:[%s3 + $0x60] sm:$0xff]
    %v123 = vld [vmem:[%s3 + $0x68] sm:$0xff]
    %v124 = vld [vmem:[%s3 + $0x70] sm:$0xff]
    %v125 = vld [vmem:[%s3 + $0x78] sm:$0xff]
    %v126 = vld [vmem:[%s2 + $0x1] sm:$0x1]
    %v127 = vld [vmem:[%s2 + $0x2] sm:$0x1]
    %128 = vmatprep.subr.mxu0 0.0
    %129 = vmatpush1.msra.mxu0 %v110
    %130 = vmatprep.subr.mxu0 0.0
    %131 = vmatpush1.msra.mxu0 %v111
    %132 = vmatprep.subr.mxu0 0.0
    %133 = vmatpush1.msra.mxu0 %v112
    %134 = vmatprep.subr.mxu0 0.0
    %135 = vmatpush1.msra.mxu0 %v113
    %136 = vmatprep.subr.mxu0 0.0
    %137 = vmatpush1.msra.mxu0 %v114
    %138 = vmatprep.subr.mxu0 0.0
    %139 = vmatpush1.msra.mxu0 %v115
    %140 = vmatprep.subr.mxu0 0.0
    %141 = vmatpush1.msra.mxu0 %v116
    %142 = vmatprep.subr.mxu0 0.0
    %143 = vmatpush1.msra.mxu0 %v117
    %144 = vmatprep.subr.mxu0 0.0
    %145 = vmatpush1.msra.mxu0 %v118
    %146 = vmatprep.subr.mxu0 0.0
    %147 = vmatpush1.msra.mxu0 %v119
    %148 = vmatprep.subr.mxu0 0.0
    %149 = vmatpush1.msra.mxu0 %v120
    %150 = vmatprep.subr.mxu0 0.0
    %151 = vmatpush1.msra.mxu0 %v121
    %152 = vmatprep.subr.mxu0 0.0
    %153 = vmatpush1.msra.mxu0 %v122
    %154 = vmatprep.subr.mxu0 0.0
    %155 = vmatpush1.msra.mxu0 %v123
    %156 = vmatprep.subr.mxu0 0.0
    %157 = vmatpush1.msra.mxu0 %v124
    %158 = vmatprep.subr.mxu0 0.0
    %159 = vmatpush1.msra.mxu0 %v125
    %160 = vmatprep.subr.mxu0 0.0
    %161 = vmatpush1.msra.mxu0 0.0
    %162 = vmatprep.subr.mxu0 0.0
    %163 = vmatpush1.msra.mxu0 0.0
    %164 = vmatprep.subr.mxu0 0.0
    %165 = vmatpush1.msra.mxu0 0.0
    %166 = vmatprep.subr.mxu0 0.0
    %167 = vmatpush1.msra.mxu0 0.0
    %168 = vmatprep.subr.mxu0 0.0
    %169 = vmatpush1.msra.mxu0 0.0
    %170 = vmatprep.subr.mxu0 0.0
    %171 = vmatpush1.msra.mxu0 0.0
    %172 = vmatprep.subr.mxu0 0.0
    %173 = vmatpush1.msra.mxu0 0.0
    %174 = vmatprep.subr.mxu0 0.0
    %175 = vmatpush1.msra.mxu0 0.0
    %176 = vmatprep.subr.mxu0 0.0
    %177 = vmatpush1.msra.mxu0 0.0
    %178 = vmatprep.subr.mxu0 0.0
    %179 = vmatpush1.msra.mxu0 0.0
    %180 = vmatprep.subr.mxu0 0.0
    %181 = vmatpush1.msra.mxu0 0.0
    %182 = vmatprep.subr.mxu0 0.0
    %183 = vmatpush1.msra.mxu0 0.0
    %184 = vmatprep.subr.mxu0 0.0
    %185 = vmatpush1.msra.mxu0 0.0
    %186 = vmatprep.subr.mxu0 0.0
    %187 = vmatpush1.msra.mxu0 0.0
    %188 = vmatprep.subr.mxu0 0.0
    %189 = vmatpush1.msra.mxu0 0.0
    %190 = vmatprep.subr.mxu0 0.0
    %191 = vmatpush1.msra.mxu0 0.0
    %192 = vmatprep.mubr.f32.mxu0 0.0
    %193 = vmatmul.mubr.f32.gmra.mrb[0].mxu0 %v109
    %v194 = vpop.f32.mrb[0].mxu0
    %v195 = vadd.f32 1e-05, %v194
    %v196 = vpop.f32.mrb[0].mxu0
    %197 = vdwg.mxu0
    %v198 = vrsqrt.pop %v195
    %v199 = vmul.f32 %v108, %v198
    %v200 = vlaneseq
    %v201 = vshrl.u32 %v200, 7
    %v202 = vsub.s32 0, %v201
    %v203 = vrot.slane %v126, %v202
    %v204 = vmul.f32 %v199, %v203
    %v205 = vlaneseq
    %v206 = vshrl.u32 %v205, 7
    %v207 = vsub.s32 0, %v206
    %v208 = vrot.slane %v127, %v207
    %v209 = vadd.f32 %v204, %v208
    %vm210 = vcmask 523264
    %211 = vst.msk [vmem:[#allocation2] sm:$0xff] %vm210, %v209
    // Predicated region
    $region18: #{tpu_custom_call.1} parent=1 // pred_check
      _
    $region19: #{tpu_custom_call.1} parent=1 // pred_check_branch
      %213 = sbr.rel (0) target = $region21
    $region20: #{tpu_custom_call.1} parent=1 // pred_region
      %s215 = ssub.s32 128, 128
      %216 = vsyncadd [#allocation3], %s215
      %s218 = sshll.u32 [#allocation2], 4
      %s219 = int_to_ptr.vmem [resolvable:$true] %s218
      %221 = dma.vmem_to_hbm [thread:$0]  %s219, 128, %s4, [#allocation3]
    $region21: #{tpu_custom_call.1} parent=1 // pred_fallthru
      _
    // Predicated region
    $region22: #{tpu_custom_call.1} parent=1 // pred_check
      _
    $region23: #{tpu_custom_call.1} parent=1 // pred_check_branch
      %223 = sbr.rel (0) target = $region25
    $region24: #{tpu_custom_call.1} parent=1 // pred_region
      %224 = dma.done [#allocation3], 128
    $region25: #{tpu_custom_call.1} parent=1 // pred_fallthru
      _
    %225 = vsyncpa [#allocation3], 1

</llo_original>
